<compile_context>
chip_gen: v7x
topology: tpu7x:2x2x1
jax: 0.10.0
libtpu: 0.0.40
codegen_flags: <defaults>
</compile_context>

<pallas_src>
import jax
import jax.numpy as jnp
from jax.experimental import pallas as pl
from jax.experimental.pallas import tpu as pltpu


def attention_kernel(dec_ref, enc_ref, mask_ref, cov_ref,
                     wh_ref, wc_ref, v_ref,
                     ctx_ref, attn_ref, newcov_ref):
    tb, S, D = enc_ref.shape

    enc = enc_ref[...]                                   # (TB, S, D)
    dec_f = dec_ref[...]                                 # (TB, D)  Ws(s_t)+b, precomputed
    mask = mask_ref[...]                                 # (TB, S)
    cov = cov_ref[...]                                   # (TB, S)

    # encoder_features = Wh(encoder_output): one fat (TB*S, D) @ (D, D) MXU matmul.
    enc_f = jnp.dot(enc.reshape(tb * S, D), wh_ref[...],
                    preferred_element_type=jnp.float32).reshape(tb, S, D)

    # att_inputs = enc_f + dec_f (broadcast over seq) + coverage_features
    # coverage_features = wc(coverage.unsqueeze(2)) == cov[..., None] * wc
    att = jnp.tanh(enc_f + dec_f[:, None, :] + cov[:, :, None] * wc_ref[...])

    # score = v(att): lane (XLU) reduction over D -> lane-dense (TB, S)
    score = jnp.sum(att * v_ref[...], axis=-1)           # (TB, S)

    # Masked softmax over the sequence (lane) axis.  Folding the padding mask
    # into the exponentials is algebraically identical to
    # softmax -> (* mask) -> renormalize (the softmax Z cancels).
    m = jnp.max(score, axis=-1, keepdims=True)           # (TB, 1)
    e = jnp.exp(score - m) * mask                        # (TB, S)
    denom = jnp.sum(e, axis=-1, keepdims=True)           # (TB, 1)
    # eps guard: avoids NaN for fully-padded rows (reference would NaN there).
    w = e * pl.reciprocal(jnp.maximum(denom, 1e-30), approx=True)   # (TB, S)

    # context_vector = attn @ encoder_output  (batched M=1 matmul contracting S)
    ctx = jnp.einsum('bqs,bsd->bqd', w[:, None, :], enc,
                     preferred_element_type=jnp.float32)[:, 0, :]    # (TB, D)

    ctx_ref[...] = ctx.astype(ctx_ref.dtype)
    attn_ref[...] = w.astype(attn_ref.dtype)
    newcov_ref[...] = (cov + w).astype(newcov_ref.dtype)


def _vmem_need_bytes(tb, S, D):
    # double-buffered encoder tile + double-buffered D*D weight + small tiles
    # + a rough 2x for in-kernel temporaries (enc_f / att live ranges).
    return 4 * (4 * tb * S * D + 2 * D * D + 2 * tb * (3 * S + 2 * D) + 4 * D)


def attention_forward(h_dec, c_dec, encoder_output, x_padding_masks,
                      coverage_vector, params, *, max_tb=8):
    """Returns (context_vector (B,D), attention_weights (B,S), coverage (B,S))."""
    wh, ws, wsb, wc, v = params
    B, S, D = encoder_output.shape

    # s_t = cat([h, c], dim=2).transpose(0,1) -> (B, D)
    s_t = jnp.concatenate([h_dec[0], c_dec[0]], axis=-1)

    # Hoisted decoder projection: one whole-batch (B,D)@(D,D) matmul instead of
    # B*S replicated M=1 matmuls (PyTorch's expand_as path) inside the grid.
    dec_f = jnp.dot(s_t, ws, preferred_element_type=jnp.float32) + wsb     # (B, D)

    # Batch tile: largest divisor of B that is <= max_tb and fits a conservative
    # VMEM budget (within the default 32 MiB scoped limit on every generation).
    vmem_budget = 24 * 1024 * 1024
    tb = 1
    for cand in range(min(max_tb, B), 0, -1):
        if B % cand == 0 and _vmem_need_bytes(cand, S, D) <= vmem_budget:
            tb = cand
            break

    cost = pl.CostEstimate(
        flops=int(2 * B * S * D * D + 2 * B * S * D + 8 * B * S * D),
        transcendentals=int(B * S * D + B * S),             # tanh + exp
        bytes_accessed=int(4 * (B * S * D + D * D + 5 * B * S + 2 * B * D + 2 * D)),
    )

    return pl.pallas_call(
        attention_kernel,
        out_shape=(jax.ShapeDtypeStruct((B, D), jnp.float32),
                   jax.ShapeDtypeStruct((B, S), jnp.float32),
                   jax.ShapeDtypeStruct((B, S), jnp.float32)),
        grid=(B // tb,),
        in_specs=[
            pl.BlockSpec((tb, D),    lambda b: (b, 0)),      # dec_f = Ws(s_t)+b
            pl.BlockSpec((tb, S, D), lambda b: (b, 0, 0)),   # encoder_output
            pl.BlockSpec((tb, S),    lambda b: (b, 0)),      # padding mask
            pl.BlockSpec((tb, S),    lambda b: (b, 0)),      # coverage
            pl.BlockSpec((D, D),     lambda b: (0, 0)),      # Wh   (x @ W layout)
            pl.BlockSpec((1, D),     lambda b: (0, 0)),      # wc   (1 -> D)
            pl.BlockSpec((1, D),     lambda b: (0, 0)),      # v    (D -> 1)
        ],
        out_specs=(
            pl.BlockSpec((tb, D), lambda b: (b, 0)),
            pl.BlockSpec((tb, S), lambda b: (b, 0)),
            pl.BlockSpec((tb, S), lambda b: (b, 0)),
        ),
        compiler_params=pltpu.CompilerParams(dimension_semantics=("parallel",)),
        cost_estimate=cost,
    )(dec_f, encoder_output, x_padding_masks, coverage_vector, wh, wc, v)


def reference_forward(h_dec, c_dec, enc, mask, cov, params):
    """Pure-JAX replica of the PyTorch forward (for verification)."""
    wh, ws, wsb, wc, v = params
    s_t = jnp.concatenate([h_dec[0], c_dec[0]], axis=-1)[:, None, :]   # (B,1,D)
    enc_f = enc @ wh
    dec_f = s_t @ ws + wsb
    cov_f = cov[..., None] * wc[0]
    att = jnp.tanh(enc_f + dec_f + cov_f)
    score = jnp.sum(att * v[0], axis=-1)                               # (B, S)
    w = jax.nn.softmax(score, axis=1)
    w = w * mask
    w = w / jnp.sum(w, axis=1, keepdims=True)
    ctx = jnp.einsum("bs,bsd->bd", w, enc)
    return ctx, w, cov + w


if __name__ == "__main__":
    B, H, S = 2, 16, 8
    D = 2 * H

    key = jax.random.PRNGKey(0)
    ks = jax.random.split(key, 10)

    # Inputs (match PyTorch forward signature shapes)
    h_dec = jax.random.normal(ks[0], (1, B, H), jnp.float32)
    c_dec = jax.random.normal(ks[1], (1, B, H), jnp.float32)
    encoder_output = jax.random.normal(ks[2], (B, S, D), jnp.float32)
    x_padding_masks = jnp.ones((B, S), jnp.float32).at[:, -2:].set(0.0)
    coverage_vector = jax.random.uniform(ks[3], (B, S), jnp.float32)

    # Deterministic parameter init (stored in x @ W orientation).
    scale = 1.0 / jnp.sqrt(jnp.float32(D))
    wh  = jax.random.normal(ks[4], (D, D), jnp.float32) * scale   # Wh (no bias)
    ws  = jax.random.normal(ks[5], (D, D), jnp.float32) * scale   # Ws weight
    wsb = jax.random.normal(ks[6], (1, D), jnp.float32) * scale   # Ws bias
    wc  = jax.random.normal(ks[7], (1, D), jnp.float32) * scale   # wc: 1 -> D (no bias)
    v   = jax.random.normal(ks[8], (1, D), jnp.float32) * scale   # v : D -> 1 (no bias)
    params = (wh, ws, wsb, wc, v)

    ctx, attn, new_cov = attention_forward(
        h_dec, c_dec, encoder_output, x_padding_masks, coverage_vector, params)
    jax.block_until_ready((ctx, attn, new_cov))

    ctx_r, attn_r, cov_r = reference_forward(
        h_dec, c_dec, encoder_output, x_padding_masks, coverage_vector, params)

    # Tolerance slightly loosened for pl.reciprocal(approx=True) in the renorm.
    assert jnp.allclose(ctx, ctx_r, rtol=5e-3, atol=5e-3)
    assert jnp.allclose(attn, attn_r, rtol=5e-3, atol=5e-3)
    assert jnp.allclose(new_cov, cov_r, rtol=5e-3, atol=5e-3)

    print("KERNEL_OK")
</pallas_src>

<mosaic_0001>
module attributes {stable_mosaic.version = 11 : i64} {
  func.func @attention_kernel(%arg0: i32, %arg1: memref<2x32xf32, #tpu.memory_space<vmem>>, %arg2: memref<2x8x32xf32, #tpu.memory_space<vmem>>, %arg3: memref<2x8xf32, #tpu.memory_space<vmem>>, %arg4: memref<2x8xf32, #tpu.memory_space<vmem>>, %arg5: memref<32x32xf32, #tpu.memory_space<vmem>>, %arg6: memref<1x32xf32, #tpu.memory_space<vmem>>, %arg7: memref<1x32xf32, #tpu.memory_space<vmem>>, %arg8: memref<2x32xf32, #tpu.memory_space<vmem>>, %arg9: memref<2x8xf32, #tpu.memory_space<vmem>>, %arg10: memref<2x8xf32, #tpu.memory_space<vmem>>) attributes {dimension_semantics = [#tpu.dimension_semantics<parallel>], iteration_bounds = array<i64: 1>, scalar_prefetch = 0 : i64, scratch_operands = 0 : i64, tpu.core_type = #tpu.core_type<tc>, window_params = [{transform_indices = @transform_0, window_bounds = array<i64: 2, 32>}, {transform_indices = @transform_1, window_bounds = array<i64: 2, 8, 32>}, {transform_indices = @transform_2, window_bounds = array<i64: 2, 8>}, {transform_indices = @transform_3, window_bounds = array<i64: 2, 8>}, {pipeline_mode = #tpu.pipeline_mode<synchronous>, transform_indices = @transform_4, window_bounds = array<i64: 32, 32>}, {pipeline_mode = #tpu.pipeline_mode<synchronous>, transform_indices = @transform_5, window_bounds = array<i64: 1, 32>}, {pipeline_mode = #tpu.pipeline_mode<synchronous>, transform_indices = @transform_6, window_bounds = array<i64: 1, 32>}, {transform_indices = @transform_7, window_bounds = array<i64: 2, 32>}, {transform_indices = @transform_8, window_bounds = array<i64: 2, 8>}, {transform_indices = @transform_9, window_bounds = array<i64: 2, 8>}]} {
    %c0 = arith.constant 0 : index
    %c0_0 = arith.constant 0 : index
    %c0_1 = arith.constant 0 : index
    %0 = vector.load %arg2[%c0, %c0_0, %c0_1] : memref<2x8x32xf32, #tpu.memory_space<vmem>>, vector<2x8x32xf32>
    %c0_2 = arith.constant 0 : index
    %c0_3 = arith.constant 0 : index
    %1 = vector.load %arg1[%c0_2, %c0_3] : memref<2x32xf32, #tpu.memory_space<vmem>>, vector<2x32xf32>
    %c0_4 = arith.constant 0 : index
    %c0_5 = arith.constant 0 : index
    %2 = vector.load %arg3[%c0_4, %c0_5] : memref<2x8xf32, #tpu.memory_space<vmem>>, vector<2x8xf32>
    %c0_6 = arith.constant 0 : index
    %c0_7 = arith.constant 0 : index
    %3 = vector.load %arg4[%c0_6, %c0_7] : memref<2x8xf32, #tpu.memory_space<vmem>>, vector<2x8xf32>
    %4 = vector.shape_cast %0 : vector<2x8x32xf32> to vector<16x32xf32>
    %c0_8 = arith.constant 0 : index
    %c0_9 = arith.constant 0 : index
    %5 = vector.load %arg5[%c0_8, %c0_9] : memref<32x32xf32, #tpu.memory_space<vmem>>, vector<32x32xf32>
    %cst = arith.constant dense<0.000000e+00> : vector<16x32xf32>
    %6 = tpu.matmul %4, %5, %cst {dimension_numbers = #tpu.dot_dimension_numbers<[1], [0], [0], [1], [0, 0, 1, 1], [], []>} : vector<16x32xf32>, vector<32x32xf32>, vector<16x32xf32> -> vector<16x32xf32>
    %7 = vector.shape_cast %6 : vector<16x32xf32> to vector<2x8x32xf32>
    %8 = vector.shape_cast %1 : vector<2x32xf32> to vector<2x1x32xf32>
    %9 = vector.broadcast %8 : vector<2x1x32xf32> to vector<2x8x32xf32>
    %10 = arith.addf %7, %9 : vector<2x8x32xf32>
    %11 = vector.shape_cast %3 : vector<2x8xf32> to vector<2x8x1xf32>
    %c0_10 = arith.constant 0 : index
    %c0_11 = arith.constant 0 : index
    %12 = vector.load %arg6[%c0_10, %c0_11] : memref<1x32xf32, #tpu.memory_space<vmem>>, vector<1x32xf32>
    %13 = vector.shape_cast %12 : vector<1x32xf32> to vector<1x1x32xf32>
    %14 = vector.broadcast %11 : vector<2x8x1xf32> to vector<2x8x32xf32>
    %15 = vector.broadcast %13 : vector<1x1x32xf32> to vector<2x8x32xf32>
    %16 = arith.mulf %14, %15 : vector<2x8x32xf32>
    %17 = arith.addf %10, %16 : vector<2x8x32xf32>
    %18 = math.tanh %17 : vector<2x8x32xf32>
    %c0_12 = arith.constant 0 : index
    %c0_13 = arith.constant 0 : index
    %19 = vector.load %arg7[%c0_12, %c0_13] : memref<1x32xf32, #tpu.memory_space<vmem>>, vector<1x32xf32>
    %20 = vector.shape_cast %19 : vector<1x32xf32> to vector<1x1x32xf32>
    %21 = vector.broadcast %20 : vector<1x1x32xf32> to vector<2x8x32xf32>
    %22 = arith.mulf %18, %21 : vector<2x8x32xf32>
    %cst_14 = arith.constant dense<0.000000e+00> : vector<2x8xf32>
    %23 = vector.multi_reduction <add>, %22, %cst_14 [2] : vector<2x8x32xf32> to vector<2x8xf32>
    %cst_15 = arith.constant dense<0xFF800000> : vector<2xf32>
    %24 = vector.multi_reduction <maximumf>, %23, %cst_15 [1] : vector<2x8xf32> to vector<2xf32>
    %25 = vector.shape_cast %24 : vector<2xf32> to vector<2x1xf32>
    %26 = vector.broadcast %25 : vector<2x1xf32> to vector<2x8xf32>
    %27 = arith.subf %23, %26 : vector<2x8xf32>
    %28 = math.exp %27 : vector<2x8xf32>
    %29 = arith.mulf %28, %2 : vector<2x8xf32>
    %cst_16 = arith.constant dense<0.000000e+00> : vector<2xf32>
    %30 = vector.multi_reduction <add>, %29, %cst_16 [1] : vector<2x8xf32> to vector<2xf32>
    %31 = vector.shape_cast %30 : vector<2xf32> to vector<2x1xf32>
    %cst_17 = arith.constant 1.000000e-30 : f32
    %32 = vector.broadcast %cst_17 : f32 to vector<2x1xf32>
    %33 = arith.maximumf %31, %32 : vector<2x1xf32>
    %34 = tpu.reciprocal %33 {approx = true} : vector<2x1xf32> -> vector<2x1xf32>
    %35 = vector.broadcast %34 : vector<2x1xf32> to vector<2x8xf32>
    %36 = arith.mulf %29, %35 : vector<2x8xf32>
    %37 = vector.shape_cast %36 : vector<2x8xf32> to vector<2x1x8xf32>
    "tpu.trace_start"() <{level = 10 : i32, message = "bqs,bsd->bqd"}> : () -> ()
    %cst_18 = arith.constant dense<0.000000e+00> : vector<2x1x32xf32>
    %38 = tpu.matmul %37, %0, %cst_18 {dimension_numbers = #tpu.dot_dimension_numbers<[2], [1], [1], [2], [0, 0, 0, 1, 1, 2], [0], [0]>} : vector<2x1x8xf32>, vector<2x8x32xf32>, vector<2x1x32xf32> -> vector<2x1x32xf32>
    "tpu.trace_stop"() : () -> ()
    %39 = vector.shape_cast %38 : vector<2x1x32xf32> to vector<2x32xf32>
    %c0_19 = arith.constant 0 : index
    %c0_20 = arith.constant 0 : index
    %40 = vector.load %arg8[%c0_19, %c0_20] : memref<2x32xf32, #tpu.memory_space<vmem>>, vector<2x32xf32>
    tpu.vector_store %arg8[%c0_19, %c0_20], %39 {strides = array<i32>} : memref<2x32xf32, #tpu.memory_space<vmem>>, vector<2x32xf32>,
    %c0_21 = arith.constant 0 : index
    %c0_22 = arith.constant 0 : index
    %41 = vector.load %arg9[%c0_21, %c0_22] : memref<2x8xf32, #tpu.memory_space<vmem>>, vector<2x8xf32>
    tpu.vector_store %arg9[%c0_21, %c0_22], %36 {strides = array<i32>} : memref<2x8xf32, #tpu.memory_space<vmem>>, vector<2x8xf32>,
    %42 = arith.addf %3, %36 : vector<2x8xf32>
    %c0_23 = arith.constant 0 : index
    %c0_24 = arith.constant 0 : index
    %43 = vector.load %arg10[%c0_23, %c0_24] : memref<2x8xf32, #tpu.memory_space<vmem>>, vector<2x8xf32>
    tpu.vector_store %arg10[%c0_23, %c0_24], %42 {strides = array<i32>} : memref<2x8xf32, #tpu.memory_space<vmem>>, vector<2x8xf32>,
    return
  }
  func.func @transform_0(%arg0: i32) -> (i32, i32) {
    %c0_i32 = arith.constant 0 : i32
    %c0_i32_0 = arith.constant 0 : i32
    return %arg0, %c0_i32 : i32, i32
  }
  func.func @transform_1(%arg0: i32) -> (i32, i32, i32) {
    %c0_i32 = arith.constant 0 : i32
    %c0_i32_0 = arith.constant 0 : i32
    %c0_i32_1 = arith.constant 0 : i32
    return %arg0, %c0_i32, %c0_i32_0 : i32, i32, i32
  }
  func.func @transform_2(%arg0: i32) -> (i32, i32) {
    %c0_i32 = arith.constant 0 : i32
    %c0_i32_0 = arith.constant 0 : i32
    return %arg0, %c0_i32 : i32, i32
  }
  func.func @transform_3(%arg0: i32) -> (i32, i32) {
    %c0_i32 = arith.constant 0 : i32
    %c0_i32_0 = arith.constant 0 : i32
    return %arg0, %c0_i32 : i32, i32
  }
  func.func @transform_4(%arg0: i32) -> (i32, i32) {
    %c0_i32 = arith.constant 0 : i32
    %c0_i32_0 = arith.constant 0 : i32
    %c0_i32_1 = arith.constant 0 : i32
    return %c0_i32, %c0_i32_0 : i32, i32
  }
  func.func @transform_5(%arg0: i32) -> (i32, i32) {
    %c0_i32 = arith.constant 0 : i32
    %c0_i32_0 = arith.constant 0 : i32
    %c0_i32_1 = arith.constant 0 : i32
    return %c0_i32, %c0_i32_0 : i32, i32
  }
  func.func @transform_6(%arg0: i32) -> (i32, i32) {
    %c0_i32 = arith.constant 0 : i32
    %c0_i32_0 = arith.constant 0 : i32
    %c0_i32_1 = arith.constant 0 : i32
    return %c0_i32, %c0_i32_0 : i32, i32
  }
  func.func @transform_7(%arg0: i32) -> (i32, i32) {
    %c0_i32 = arith.constant 0 : i32
    %c0_i32_0 = arith.constant 0 : i32
    return %arg0, %c0_i32 : i32, i32
  }
  func.func @transform_8(%arg0: i32) -> (i32, i32) {
    %c0_i32 = arith.constant 0 : i32
    %c0_i32_0 = arith.constant 0 : i32
    return %arg0, %c0_i32 : i32, i32
  }
  func.func @transform_9(%arg0: i32) -> (i32, i32) {
    %c0_i32 = arith.constant 0 : i32
    %c0_i32_0 = arith.constant 0 : i32
    return %arg0, %c0_i32 : i32, i32
  }
}

</mosaic_0001>

<llo_original>
// kernel: tpu_custom_call.1
$region0: #{tpu_custom_call.1}
  #allocation0 [shape = 'u32[]', space=smem, size = 0x4, offset = 0x4, fixed_abs, tag = 'smem constant byte address 0x4 - core index']
  #allocation1 [shape = 'u32[144,128]{1,0:T(1,128)}', space=vmem, size = 0x12000, scoped, tag = 'internal scratch']
  %s0 = inlined_call_operand.hbm [shape: f32[2,32], index: 0, kind: input, shape index: {}]
  %s1 = inlined_call_operand.hbm [shape: f32[2,8,32], index: 1, kind: input, shape index: {}]
  %s2 = inlined_call_operand.vmem [shape: f32[2,8], index: 2, kind: input, shape index: {}]
  %s3 = inlined_call_operand.vmem [shape: f32[2,8], index: 3, kind: input, shape index: {}]
  %s4 = inlined_call_operand.hbm [shape: f32[32,32], index: 4, kind: input, shape index: {}]
  %s5 = inlined_call_operand.vmem [shape: f32[1,32], index: 5, kind: input, shape index: {}]
  %s6 = inlined_call_operand.vmem [shape: f32[1,32], index: 6, kind: input, shape index: {}]
  %s7 = inlined_call_operand.hbm [shape: f32[2,32], index: 7, kind: output, shape index: {0}]
  %s8 = inlined_call_operand.hbm [shape: f32[2,8], index: 8, kind: output, shape index: {1}]
  %s9 = inlined_call_operand.hbm [shape: f32[2,8], index: 9, kind: output, shape index: {2}]
  %10 = xla_tuple %s7, %s8, %s9
  %s11 = sld [smem:[#allocation0]]
  $region66: #{tpu_custom_call.1} parent=0
    _
  %s13 = ssub.s32 1, %s11
  %s14 = scalar_select 0, %s13, %s11
  $region1: #{tpu_custom_call.1} parent=0
    #allocation2 [shape = 'u8[1024]{0}', space=vmem, size = 0x400, scoped, tag = 'input window, operand 0, single buffered']
    #allocation3 [shape = 's32[1]{0}', space=sflag, size = 0x4, scoped, tag = 'scoped memory for tpu_custom_call.1']
    #allocation4 [shape = 's32[1]{0}', space=sflag, size = 0x4, scoped, tag = 'scoped memory for tpu_custom_call.1']
    #allocation5 [shape = 'u8[8192]{0}', space=vmem, size = 0x2000, scoped, tag = 'input window, operand 1, single buffered']
    #allocation6 [shape = 's32[1]{0}', space=sflag, size = 0x4, scoped, tag = 'scoped memory for tpu_custom_call.1']
    #allocation7 [shape = 'u8[16384]{0}', space=vmem, size = 0x4000, scoped, tag = 'input window, operand 4, single buffered']
    #allocation8 [shape = 'u8[1024]{0}', space=vmem, size = 0x400, scoped, tag = 'output window, operand 0, single buffered']
    #allocation9 [shape = 'u8[1024]{0}', space=vmem, size = 0x400, scoped, tag = 'output window, operand 1, single buffered']
    #allocation10 [shape = 's32[1]{0}', space=sflag, size = 0x4, scoped, tag = 'scoped memory for tpu_custom_call.1']
    #allocation11 [shape = 'u8[1024]{0}', space=vmem, size = 0x400, scoped, tag = 'output window, operand 2, single buffered']
    %15 = vsyncpa [#allocation3], 0
    %16 = vsyncpa [#allocation6], 0
    %17 = vsyncpa [#allocation4], 0
    %18 = vsyncpa [#allocation10], 0
    // Predicated region
    $region2: #{tpu_custom_call.1} parent=1 // pred_check
      _
    $region3: #{tpu_custom_call.1} parent=1 // pred_check_branch
      %20 = sbr.rel (0) target = $region5
    $region4: #{tpu_custom_call.1} parent=1 // pred_region
      %s22 = ssub.s32 32, 32
      %23 = vsyncadd [#allocation3], %s22
      %s25 = sshll.u32 [#allocation2], 4
      %s26 = int_to_ptr.vmem [resolvable:$true] %s25
      %28 = dma.hbm_to_vmem [thread:$0]  %s0, 32, %s26, [#allocation3]
    $region5: #{tpu_custom_call.1} parent=1 // pred_fallthru
      _
    // Predicated region
    $region6: #{tpu_custom_call.1} parent=1 // pred_check
      _
    $region7: #{tpu_custom_call.1} parent=1 // pred_check_branch
      %30 = sbr.rel (0) target = $region9
    $region8: #{tpu_custom_call.1} parent=1 // pred_region
      %s32 = ssub.s32 256, 256
      %33 = vsyncadd [#allocation6], %s32
      %s34 = sshll.u32 [#allocation5], 4
      %s35 = int_to_ptr.vmem [resolvable:$true] %s34
      %40 = dma.hbm_to_vmem [thread:$0]  %s1, 256, %s35, [#allocation6], 128, 128, 8
    $region9: #{tpu_custom_call.1} parent=1 // pred_fallthru
      _
    // Predicated region
    $region10: #{tpu_custom_call.1} parent=1 // pred_check
      _
    $region11: #{tpu_custom_call.1} parent=1 // pred_check_branch
      %42 = sbr.rel (0) target = $region13
    $region12: #{tpu_custom_call.1} parent=1 // pred_region
      _
    $region13: #{tpu_custom_call.1} parent=1 // pred_fallthru
      _
    // Predicated region
    $region14: #{tpu_custom_call.1} parent=1 // pred_check
      _
    $region15: #{tpu_custom_call.1} parent=1 // pred_check_branch
      %44 = sbr.rel (0) target = $region17
    $region16: #{tpu_custom_call.1} parent=1 // pred_region
      _
    $region17: #{tpu_custom_call.1} parent=1 // pred_fallthru
      _
    // Predicated region
    $region18: #{tpu_custom_call.1} parent=1 // pred_check
      _
    $region19: #{tpu_custom_call.1} parent=1 // pred_check_branch
      %46 = sbr.rel (0) target = $region21
    $region20: #{tpu_custom_call.1} parent=1 // pred_region
      %s48 = ssub.s32 512, 512
      %49 = vsyncadd [#allocation6], %s48
      %s50 = sshll.u32 [#allocation7], 4
      %s51 = int_to_ptr.vmem [resolvable:$true] %s50
      %56 = dma.hbm_to_vmem [thread:$0]  %s4, 512, %s51, [#allocation6], 128, 128, 8
    $region21: #{tpu_custom_call.1} parent=1 // pred_fallthru
      _
    // Predicated region
    $region22: #{tpu_custom_call.1} parent=1 // pred_check
      _
    $region23: #{tpu_custom_call.1} parent=1 // pred_check_branch
      %58 = sbr.rel (0) target = $region25
    $region24: #{tpu_custom_call.1} parent=1 // pred_region
      _
    $region25: #{tpu_custom_call.1} parent=1 // pred_fallthru
      _
    // Predicated region
    $region26: #{tpu_custom_call.1} parent=1 // pred_check
      _
    $region27: #{tpu_custom_call.1} parent=1 // pred_check_branch
      %60 = sbr.rel (0) target = $region29
    $region28: #{tpu_custom_call.1} parent=1 // pred_region
      _
    $region29: #{tpu_custom_call.1} parent=1 // pred_fallthru
      _
    // Predicated region
    $region30: #{tpu_custom_call.1} parent=1 // pred_check
      _
    $region31: #{tpu_custom_call.1} parent=1 // pred_check_branch
      %62 = sbr.rel (0) target = $region33
    $region32: #{tpu_custom_call.1} parent=1 // pred_region
      %63 = dma.done [#allocation3], 32
    $region33: #{tpu_custom_call.1} parent=1 // pred_fallthru
      _
    // Predicated region
    $region34: #{tpu_custom_call.1} parent=1 // pred_check
      _
    $region35: #{tpu_custom_call.1} parent=1 // pred_check_branch
      %65 = sbr.rel (0) target = $region37
    $region36: #{tpu_custom_call.1} parent=1 // pred_region
      %66 = dma.done [#allocation6], 256
    $region37: #{tpu_custom_call.1} parent=1 // pred_fallthru
      _
    // Predicated region
    $region38: #{tpu_custom_call.1} parent=1 // pred_check
      _
    $region39: #{tpu_custom_call.1} parent=1 // pred_check_branch
      %68 = sbr.rel (0) target = $region41
    $region40: #{tpu_custom_call.1} parent=1 // pred_region
      %69 = dma.done [#allocation6], 512
    $region41: #{tpu_custom_call.1} parent=1 // pred_fallthru
      _
    %v70 = vld [vmem:[#allocation5] sm:$0xff]
    %v71 = vld [vmem:[#allocation5 + $0x8] sm:$0xff]
    %v72 = vld [vmem:[#allocation2] sm:$0x3]
    %v73 = vld [vmem:[%s2] sm:$0x3]
    %v74 = vld [vmem:[%s3] sm:$0x3]
    %v75 = vld [vmem:[#allocation7] sm:$0xff]
    %v76 = vld [vmem:[#allocation7 + $0x8] sm:$0xff]
    %v77 = vld [vmem:[#allocation7 + $0x10] sm:$0xff]
    %v78 = vld [vmem:[#allocation7 + $0x18] sm:$0xff]
    %vm79 = vcmask 261120
    %v81 = vsel %vm79, %v70, 0
    %v84 = vsel %vm79, %v71, 0
    %86 = vmatprep.subr.mxu0 0.0
    %87 = vmatpush1.msra.mxu0 %v75
    %88 = vmatprep.subr.mxu0 0.0
    %89 = vmatpush1.msra.mxu0 %v76
    %90 = vmatprep.subr.mxu0 0.0
    %91 = vmatpush1.msra.mxu0 %v77
    %92 = vmatprep.subr.mxu0 0.0
    %93 = vmatpush1.msra.mxu0 %v78
    %94 = vmatprep.subr.mxu0 0.0
    %95 = vmatpush1.msra.mxu0 0.0
    %96 = vmatprep.subr.mxu0 0.0
    %97 = vmatpush1.msra.mxu0 0.0
    %98 = vmatprep.subr.mxu0 0.0
    %99 = vmatpush1.msra.mxu0 0.0
    %100 = vmatprep.subr.mxu0 0.0
    %101 = vmatpush1.msra.mxu0 0.0
    %102 = vmatprep.subr.mxu0 0.0
    %103 = vmatpush1.msra.mxu0 0.0
    %104 = vmatprep.subr.mxu0 0.0
    %105 = vmatpush1.msra.mxu0 0.0
    %106 = vmatprep.subr.mxu0 0.0
    %107 = vmatpush1.msra.mxu0 0.0
    %108 = vmatprep.subr.mxu0 0.0
    %109 = vmatpush1.msra.mxu0 0.0
    %110 = vmatprep.subr.mxu0 0.0
    %111 = vmatpush1.msra.mxu0 0.0
    %112 = vmatprep.subr.mxu0 0.0
    %113 = vmatpush1.msra.mxu0 0.0
    %114 = vmatprep.subr.mxu0 0.0
    %115 = vmatpush1.msra.mxu0 0.0
    %116 = vmatprep.subr.mxu0 0.0
    %117 = vmatpush1.msra.mxu0 0.0
    %118 = vmatprep.subr.mxu0 0.0
    %119 = vmatpush1.msra.mxu0 0.0
    %120 = vmatprep.subr.mxu0 0.0
    %121 = vmatpush1.msra.mxu0 0.0
    %122 = vmatprep.subr.mxu0 0.0
    %123 = vmatpush1.msra.mxu0 0.0
    %124 = vmatprep.subr.mxu0 0.0
    %125 = vmatpush1.msra.mxu0 0.0
    %126 = vmatprep.subr.mxu0 0.0
    %127 = vmatpush1.msra.mxu0 0.0
    %128 = vmatprep.subr.mxu0 0.0
    %129 = vmatpush1.msra.mxu0 0.0
    %130 = vmatprep.subr.mxu0 0.0
    %131 = vmatpush1.msra.mxu0 0.0
    %132 = vmatprep.subr.mxu0 0.0
    %133 = vmatpush1.msra.mxu0 0.0
    %134 = vmatprep.subr.mxu0 0.0
    %135 = vmatpush1.msra.mxu0 0.0
    %136 = vmatprep.subr.mxu0 0.0
    %137 = vmatpush1.msra.mxu0 0.0
    %138 = vmatprep.subr.mxu0 0.0
    %139 = vmatpush1.msra.mxu0 0.0
    %140 = vmatprep.subr.mxu0 0.0
    %141 = vmatpush1.msra.mxu0 0.0
    %142 = vmatprep.subr.mxu0 0.0
    %143 = vmatpush1.msra.mxu0 0.0
    %144 = vmatprep.subr.mxu0 0.0
    %145 = vmatpush1.msra.mxu0 0.0
    %146 = vmatprep.subr.mxu0 0.0
    %147 = vmatpush1.msra.mxu0 0.0
    %148 = vmatprep.subr.mxu0 0.0
    %149 = vmatpush1.msra.mxu0 0.0
    %150 = vmatprep.mubr.f32.mxu0 0.0
    %151 = vmatmul.mubr.f32.gmra.mrb[0].mxu0 %v81
    %v152 = vpop.f32.mrb[0].mxu0
    %v153 = vadd.f32 0.0, %v152
    %v154 = vpop.f32.mrb[0].mxu0
    %155 = vmatprep.mubr.f32.mxu0 0.0
    %156 = vmatmul.mubr.f32.gmra.mrb[0].mxu0 %v84
    %v157 = vpop.f32.mrb[0].mxu0
    %v158 = vadd.f32 0.0, %v157
    %v159 = vpop.f32.mrb[0].mxu0
    %160 = vdwg.mxu0
    %v163 = vunpack.c.l.s4 1966171168
    %v164 = vunpack.c.0.s8 %v163
    %v165 = vlaneseq
    %v166 = vshrl.u32 %v165, 7
    %v167 = vsub.s32 %v164, %v166
    %v168 = vrot.slane %v72, %v167
    %v169 = vcombine.high %v168, %v168
    %v171 = vunpack.c.l.s4 1966171168
    %v172 = vunpack.c.0.s8 %v171
    %v173 = vlaneseq
    %v174 = vshrl.u32 %v173, 7
    %v175 = vsub.s32 %v172, %v174
    %v176 = vrot.slane %v168, %v175
    %v178 = vunpack.c.l.s4 1966171168
    %v179 = vunpack.c.0.s8 %v178
    %v180 = vlaneseq
    %v181 = vshrl.u32 %v180, 7
    %v182 = vsub.s32 %v179, %v181
    %v183 = vrot.slane %v169, %v182
    %v184 = vlaneseq
    %v185 = vshrl.u32 %v184, 7
    %v186 = vsub.s32 0, %v185
    %v187 = vrot.slane %v176, %v186
    %v188 = vlaneseq
    %v189 = vshrl.u32 %v188, 7
    %v190 = vsub.s32 0, %v189
    %v191 = vrot.slane %v183, %v190
    %v194 = vadd.f32 %v153, %v187
    %v195 = vadd.f32 %v158, %v191
    %v196 = vlaneseq
    %v197 = vshrl.u32 %v196, 7
    %v198 = vsub.s32 0, %v197
    %v199 = vrot.slane %v74, %v198
    %201 = vbcast.lane.b32.xlu0 %v199, 256
    %v202 = vpop.permute.xlu0 %201
    %v203 = vlaneseq
    %v204 = vshrl.u32 %v203, 7
    %v205 = vsub.s32 1, %v204
    %v206 = vrot.slane %v74, %v205
    %208 = vbcast.lane.b32.xlu0 %v206, 256
    %v209 = vpop.permute.xlu0 %208
    %v210 = vld [vmem:[%s5] sm:$0x1]
    %v212 = vlaneseq
    %v213 = vshrl.u32 %v212, 7
    %v214 = vsub.s32 0, %v213
    %v215 = vrot.slane %v210, %v214
    %v217 = vmul.f32 %v202, %v215
    %v218 = vmul.f32 %v209, %v215
    %v219 = vadd.f32 %v194, %v217
    %v220 = vadd.f32 %v195, %v218
    %v221 = vtanh.pop %v219
    %v222 = vtanh.pop %v220
    %v223 = vld [vmem:[%s6] sm:$0x1]
    %v225 = vlaneseq
    %v226 = vshrl.u32 %v225, 7
    %v227 = vsub.s32 0, %v226
    %v228 = vrot.slane %v223, %v227
    %v230 = vmul.f32 %v221, %v228
    %v231 = vmul.f32 %v222, %v228
    %v232 = vsel %vm79, %v230, 0.0
    %233 = vadd.xlane.f32.xlu0 %v232
    %v234 = vpop.xlane.xlu0 %233
    %v235 = vsel %vm79, %v231, 0.0
    %236 = vadd.xlane.f32.xlu0 %v235
    %v237 = vpop.xlane.xlu0 %236
    %v240 = vlaneseq
    %v241 = vand.u32 %v240, 127
    %v242 = vlaneseq
    %v243 = vshrl.u32 %v242, 7
    %v244 = vsub.s32 %v241, %v243
    %v245 = vrot.slane %v234, %v244
    %v246 = vlaneseq
    %v247 = vshrl.u32 %v246, 7
    %v248 = vsub.s32 %v241, %v247
    %v249 = vrot.slane %v237, %v248
    %vm250 = vcmask 1041409
    %v251 = vsel %vm250, %v249, %v245
    %vm253 = vcmask 58368
    %v254 = vsel %vm253, %v251, -inf
    %255 = vmax.xlane.f32.xlu0 %v254
    %v256 = vpop.xlane.xlu0 %255
    %v258 = vlaneseq
    %v259 = vshrl.u32 %v258, 7
    %v260 = vsub.s32 0, %v259
    %v261 = vrot.slane %v256, %v260
    %v262 = vlaneseq
    %v263 = vshrl.u32 %v262, 7
    %v264 = vsub.s32 1, %v263
    %v265 = vrot.slane %v256, %v264
    %v268 = vsub.f32 %v234, %v261
    %v269 = vsub.f32 %v237, %v265
    %v270 = vmul.f32 %v268, 1.442695
    %v271 = vpow.pop %v270
    %v272 = vmul.f32 %v269, 1.442695
    %v273 = vpow.pop %v272
    %v275 = vlaneseq
    %v276 = vshrl.u32 %v275, 7
    %v277 = vsub.s32 0, %v276
    %v278 = vrot.slane %v73, %v277
    %280 = vbcast.lane.b32.xlu0 %v278, 256
    %v281 = vpop.permute.xlu0 %280
    %v282 = vlaneseq
    %v283 = vshrl.u32 %v282, 7
    %v284 = vsub.s32 1, %v283
    %v285 = vrot.slane %v73, %v284
    %287 = vbcast.lane.b32.xlu0 %v285, 256
    %v288 = vpop.permute.xlu0 %287
    %v291 = vmul.f32 %v271, %v281
    %v292 = vmul.f32 %v273, %v288
    %295 = vset.pattern.permute.xlu0 0
    %296 = vperm.xlu0 %295, %v291
    %v297 = vpop.permute.xlu0 %296
    %298 = vset.pattern.permute.xlu0 0
    %299 = vperm.xlu0 %298, %v292
    %v300 = vpop.permute.xlu0 %299
    %v301 = vlaneseq
    %v302 = vshrl.u32 %v301, 7
    %v303 = vsub.s32 %v241, %v302
    %v304 = vrot.slane %v297, %v303
    %v305 = vlaneseq
    %v306 = vshrl.u32 %v305, 7
    %v307 = vsub.s32 %v241, %v306
    %v308 = vrot.slane %v300, %v307
    %v309 = vsel %vm250, %v308, %v304
    %v311 = vsel %vm253, %v309, 0.0
    %312 = vadd.xlane.f32.xlu0 %v311
    %v313 = vpop.xlane.xlu0 %312
    %v314 = vmax.f32 %v313, 1e-30
    %v315 = vrcp.pop %v314
    %v317 = vlaneseq
    %v318 = vshrl.u32 %v317, 7
    %v319 = vsub.s32 0, %v318
    %v320 = vrot.slane %v315, %v319
    %v321 = vlaneseq
    %v322 = vshrl.u32 %v321, 7
    %v323 = vsub.s32 1, %v322
    %v324 = vrot.slane %v315, %v323
    %v327 = vmul.f32 %v291, %v320
    %v328 = vmul.f32 %v292, %v324
    %330 = vset.pattern.permute.xlu0 0
    %331 = vperm.xlu0 %330, %v327
    %v332 = vpop.permute.xlu0 %331
    %v333 = vlaneseq
    %v334 = vshrl.u32 %v333, 7
    %v335 = vsub.s32 %v241, %v334
    %v336 = vrot.slane %v332, %v335
    %vm337 = vcmask 64512
    %v338 = vsel %vm337, %v336, 0
    %340 = vmatprep.subr.mxu0 0.0
    %341 = vmatpush1.msra.mxu0 %v70
    %342 = vmatprep.subr.mxu0 0.0
    %343 = vmatpush1.msra.mxu0 0.0
    %344 = vmatprep.subr.mxu0 0.0
    %345 = vmatpush1.msra.mxu0 0.0
    %346 = vmatprep.subr.mxu0 0.0
    %347 = vmatpush1.msra.mxu0 0.0
    %348 = vmatprep.subr.mxu0 0.0
    %349 = vmatpush1.msra.mxu0 0.0
    %350 = vmatprep.subr.mxu0 0.0
    %351 = vmatpush1.msra.mxu0 0.0
    %352 = vmatprep.subr.mxu0 0.0
    %353 = vmatpush1.msra.mxu0 0.0
    %354 = vmatprep.subr.mxu0 0.0
    %355 = vmatpush1.msra.mxu0 0.0
    %356 = vmatprep.subr.mxu0 0.0
    %357 = vmatpush1.msra.mxu0 0.0
    %358 = vmatprep.subr.mxu0 0.0
    %359 = vmatpush1.msra.mxu0 0.0
    %360 = vmatprep.subr.mxu0 0.0
    %361 = vmatpush1.msra.mxu0 0.0
    %362 = vmatprep.subr.mxu0 0.0
    %363 = vmatpush1.msra.mxu0 0.0
    %364 = vmatprep.subr.mxu0 0.0
    %365 = vmatpush1.msra.mxu0 0.0
    %366 = vmatprep.subr.mxu0 0.0
    %367 = vmatpush1.msra.mxu0 0.0
    %368 = vmatprep.subr.mxu0 0.0
    %369 = vmatpush1.msra.mxu0 0.0
    %370 = vmatprep.subr.mxu0 0.0
    %371 = vmatpush1.msra.mxu0 0.0
    %372 = vmatprep.subr.mxu0 0.0
    %373 = vmatpush1.msra.mxu0 0.0
    %374 = vmatprep.subr.mxu0 0.0
    %375 = vmatpush1.msra.mxu0 0.0
    %376 = vmatprep.subr.mxu0 0.0
    %377 = vmatpush1.msra.mxu0 0.0
    %378 = vmatprep.subr.mxu0 0.0
    %379 = vmatpush1.msra.mxu0 0.0
    %380 = vmatprep.subr.mxu0 0.0
    %381 = vmatpush1.msra.mxu0 0.0
    %382 = vmatprep.subr.mxu0 0.0
    %383 = vmatpush1.msra.mxu0 0.0
    %384 = vmatprep.subr.mxu0 0.0
    %385 = vmatpush1.msra.mxu0 0.0
    %386 = vmatprep.subr.mxu0 0.0
    %387 = vmatpush1.msra.mxu0 0.0
    %388 = vmatprep.subr.mxu0 0.0
    %389 = vmatpush1.msra.mxu0 0.0
    %390 = vmatprep.subr.mxu0 0.0
    %391 = vmatpush1.msra.mxu0 0.0
    %392 = vmatprep.subr.mxu0 0.0
    %393 = vmatpush1.msra.mxu0 0.0
    %394 = vmatprep.subr.mxu0 0.0
    %395 = vmatpush1.msra.mxu0 0.0
    %396 = vmatprep.subr.mxu0 0.0
    %397 = vmatpush1.msra.mxu0 0.0
    %398 = vmatprep.subr.mxu0 0.0
    %399 = vmatpush1.msra.mxu0 0.0
    %400 = vmatprep.subr.mxu0 0.0
    %401 = vmatpush1.msra.mxu0 0.0
    %402 = vmatprep.subr.mxu0 0.0
    %403 = vmatpush1.msra.mxu0 0.0
    %404 = vmatprep.mubr.f32.mxu0 0.0
    %405 = vmatmul.mubr.f32.gmra.mrb[0].mxu0 %v338
    %v406 = vpop.f32.mrb[0].mxu0
    %v407 = vadd.f32 0.0, %v406
    %v408 = vpop.f32.mrb[0].mxu0
    %409 = vdwg.mxu0
    %411 = vset.pattern.permute.xlu0 0
    %412 = vperm.xlu0 %411, %v328
    %v413 = vpop.permute.xlu0 %412
    %v414 = vlaneseq
    %v415 = vshrl.u32 %v414, 7
    %v416 = vsub.s32 %v241, %v415
    %v417 = vrot.slane %v413, %v416
    %v418 = vsel %vm337, %v417, 0
    %420 = vmatprep.subr.mxu0 0.0
    %421 = vmatpush1.msra.mxu0 %v71
    %422 = vmatprep.subr.mxu0 0.0
    %423 = vmatpush1.msra.mxu0 0.0
    %424 = vmatprep.subr.mxu0 0.0
    %425 = vmatpush1.msra.mxu0 0.0
    %426 = vmatprep.subr.mxu0 0.0
    %427 = vmatpush1.msra.mxu0 0.0
    %428 = vmatprep.subr.mxu0 0.0
    %429 = vmatpush1.msra.mxu0 0.0
    %430 = vmatprep.subr.mxu0 0.0
    %431 = vmatpush1.msra.mxu0 0.0
    %432 = vmatprep.subr.mxu0 0.0
    %433 = vmatpush1.msra.mxu0 0.0
    %434 = vmatprep.subr.mxu0 0.0
    %435 = vmatpush1.msra.mxu0 0.0
    %436 = vmatprep.subr.mxu0 0.0
    %437 = vmatpush1.msra.mxu0 0.0
    %438 = vmatprep.subr.mxu0 0.0
    %439 = vmatpush1.msra.mxu0 0.0
    %440 = vmatprep.subr.mxu0 0.0
    %441 = vmatpush1.msra.mxu0 0.0
    %442 = vmatprep.subr.mxu0 0.0
    %443 = vmatpush1.msra.mxu0 0.0
    %444 = vmatprep.subr.mxu0 0.0
    %445 = vmatpush1.msra.mxu0 0.0
    %446 = vmatprep.subr.mxu0 0.0
    %447 = vmatpush1.msra.mxu0 0.0
    %448 = vmatprep.subr.mxu0 0.0
    %449 = vmatpush1.msra.mxu0 0.0
    %450 = vmatprep.subr.mxu0 0.0
    %451 = vmatpush1.msra.mxu0 0.0
    %452 = vmatprep.subr.mxu0 0.0
    %453 = vmatpush1.msra.mxu0 0.0
    %454 = vmatprep.subr.mxu0 0.0
    %455 = vmatpush1.msra.mxu0 0.0
    %456 = vmatprep.subr.mxu0 0.0
    %457 = vmatpush1.msra.mxu0 0.0
    %458 = vmatprep.subr.mxu0 0.0
    %459 = vmatpush1.msra.mxu0 0.0
    %460 = vmatprep.subr.mxu0 0.0
    %461 = vmatpush1.msra.mxu0 0.0
    %462 = vmatprep.subr.mxu0 0.0
    %463 = vmatpush1.msra.mxu0 0.0
    %464 = vmatprep.subr.mxu0 0.0
    %465 = vmatpush1.msra.mxu0 0.0
    %466 = vmatprep.subr.mxu0 0.0
    %467 = vmatpush1.msra.mxu0 0.0
    %468 = vmatprep.subr.mxu0 0.0
    %469 = vmatpush1.msra.mxu0 0.0
    %470 = vmatprep.subr.mxu0 0.0
    %471 = vmatpush1.msra.mxu0 0.0
    %472 = vmatprep.subr.mxu0 0.0
    %473 = vmatpush1.msra.mxu0 0.0
    %474 = vmatprep.subr.mxu0 0.0
    %475 = vmatpush1.msra.mxu0 0.0
    %476 = vmatprep.subr.mxu0 0.0
    %477 = vmatpush1.msra.mxu0 0.0
    %478 = vmatprep.subr.mxu0 0.0
    %479 = vmatpush1.msra.mxu0 0.0
    %480 = vmatprep.subr.mxu0 0.0
    %481 = vmatpush1.msra.mxu0 0.0
    %482 = vmatprep.subr.mxu0 0.0
    %483 = vmatpush1.msra.mxu0 0.0
    %484 = vmatprep.mubr.f32.mxu0 0.0
    %485 = vmatmul.mubr.f32.gmra.mrb[0].mxu0 %v418
    %v486 = vpop.f32.mrb[0].mxu0
    %v487 = vadd.f32 0.0, %v486
    %v488 = vpop.f32.mrb[0].mxu0
    %489 = vdwg.mxu0
    %v492 = vrot.slane %v487, 7
    %v493 = vsel %vm250, %v492, %v407
    %vm495 = vcmask 254976
    %496 = vst.msk [vmem:[#allocation8] sm:$0x3] %vm495, %v493
    %v497 = vsel %vm250, %v417, %v336
    %499 = vst.msk [vmem:[#allocation9] sm:$0x3] %vm253, %v497
    %v500 = vadd.f32 %v74, %v497
    %501 = vst.msk [vmem:[#allocation11] sm:$0x3] %vm253, %v500
    // Predicated region
    $region42: #{tpu_custom_call.1} parent=1 // pred_check
      _
    $region43: #{tpu_custom_call.1} parent=1 // pred_check_branch
      %503 = sbr.rel (0) target = $region45
    $region44: #{tpu_custom_call.1} parent=1 // pred_region
      %s505 = ssub.s32 32, 32
      %506 = vsyncadd [#allocation4], %s505
      %s508 = sshll.u32 [#allocation8], 4
      %s509 = int_to_ptr.vmem [resolvable:$true] %s508
      %511 = dma.vmem_to_hbm [thread:$0]  %s509, 32, %s7, [#allocation4]
    $region45: #{tpu_custom_call.1} parent=1 // pred_fallthru
      _
    // Predicated region
    $region46: #{tpu_custom_call.1} parent=1 // pred_check
      _
    $region47: #{tpu_custom_call.1} parent=1 // pred_check_branch
      %513 = sbr.rel (0) target = $region49
    $region48: #{tpu_custom_call.1} parent=1 // pred_region
      %s515 = ssub.s32 32, 32
      %516 = vsyncadd [#allocation10], %s515
      %s518 = sshll.u32 [#allocation9], 4
      %s519 = int_to_ptr.vmem [resolvable:$true] %s518
      %521 = dma.vmem_to_hbm [thread:$0]  %s519, 32, %s8, [#allocation10]
    $region49: #{tpu_custom_call.1} parent=1 // pred_fallthru
      _
    // Predicated region
    $region50: #{tpu_custom_call.1} parent=1 // pred_check
      _
    $region51: #{tpu_custom_call.1} parent=1 // pred_check_branch
      %523 = sbr.rel (0) target = $region53
    $region52: #{tpu_custom_call.1} parent=1 // pred_region
      %s525 = ssub.s32 32, 32
      %526 = vsyncadd [#allocation10], %s525
      %s528 = sshll.u32 [#allocation11], 4
      %s529 = int_to_ptr.vmem [resolvable:$true] %s528
      %531 = dma.vmem_to_hbm [thread:$0]  %s529, 32, %s9, [#allocation10]
    $region53: #{tpu_custom_call.1} parent=1 // pred_fallthru
      _
    // Predicated region
    $region54: #{tpu_custom_call.1} parent=1 // pred_check
      _
    $region55: #{tpu_custom_call.1} parent=1 // pred_check_branch
      %533 = sbr.rel (0) target = $region57
    $region56: #{tpu_custom_call.1} parent=1 // pred_region
      %534 = dma.done [#allocation4], 32
    $region57: #{tpu_custom_call.1} parent=1 // pred_fallthru
      _
    // Predicated region
    $region58: #{tpu_custom_call.1} parent=1 // pred_check
      _
    $region59: #{tpu_custom_call.1} parent=1 // pred_check_branch
      %536 = sbr.rel (0) target = $region61
    $region60: #{tpu_custom_call.1} parent=1 // pred_region
      %537 = dma.done [#allocation10], 32
    $region61: #{tpu_custom_call.1} parent=1 // pred_fallthru
      _
    // Predicated region
    $region62: #{tpu_custom_call.1} parent=1 // pred_check
      _
    $region63: #{tpu_custom_call.1} parent=1 // pred_check_branch
      %539 = sbr.rel (0) target = $region65
    $region64: #{tpu_custom_call.1} parent=1 // pred_region
      %540 = dma.done [#allocation10], 32
    $region65: #{tpu_custom_call.1} parent=1 // pred_fallthru
      _
    %541 = vsyncpa [#allocation3], 1
    %542 = vsyncpa [#allocation6], 1
    %543 = vsyncpa [#allocation4], 1
    %544 = vsyncpa [#allocation10], 1

</llo_original>
